<compile_context>
chip_gen: v5e
topology: v5e:2x2
jax: 0.10.0
libtpu: 0.0.40
codegen_flags: <defaults>
</compile_context>

<pallas_src>
import jax
import jax.numpy as jnp
from jax.experimental import pallas as pl
from jax.experimental.pallas import tpu as pltpu


# ----------------------------------------------------------------------------
# Frozen synthetic "WavLM" surrogate configuration
# ----------------------------------------------------------------------------
FRAME = 16        # downsampling frame size of the feature frontend
HIDDEN = 32       # true hidden width of the surrogate
HP = 128          # lane-padded hidden width used inside the kernel
NUM_LAYERS = 3    # transformer-layer surrogate count -> 4 hidden states total


# ----------------------------------------------------------------------------
# Fused Pallas kernel: surrogate forward (both streams) + L1 loss accumulation
# ----------------------------------------------------------------------------
def _fused_wavlm_loss_kernel(fw_ref, fr_ref, wf_ref, bf_ref, wl_ref, bl_ref,
                             out_ref):
    """One M-tile: run wav/y_rec frames through all layers, accumulate
    sum over hidden states of |er - eg| into an (8, HP) partial-sum block."""
    # hidden state 0: feature projection (no activation)
    er = jnp.dot(fw_ref[...], wf_ref[...],
                 preferred_element_type=jnp.float32) + bf_ref[...]
    eg = jnp.dot(fr_ref[...], wf_ref[...],
                 preferred_element_type=jnp.float32) + bf_ref[...]
    acc = jnp.abs(er - eg)

    # hidden states 1..NUM_LAYERS: linear + GELU (static python loop -> unrolled)
    for l in range(NUM_LAYERS):
        w = wl_ref[l]                       # (HP, HP), VMEM-resident
        b = bl_ref[l]                       # (1, HP)
        er = jax.nn.gelu(jnp.dot(er, w, preferred_element_type=jnp.float32) + b,
                         approximate=True)
        eg = jax.nn.gelu(jnp.dot(eg, w, preferred_element_type=jnp.float32) + b,
                         approximate=True)
        acc = acc + jnp.abs(er - eg)

    # fold the (tm, HP) accumulator into one (8, HP) vreg-shaped partial sum;
    # the final cross-lane reduce + single divide happens in the wrapper.
    tm = acc.shape[0]
    out_ref[...] = jnp.sum(acc.reshape(tm // 8, 8, HP), axis=0)


def wavlm_loss_forward(wav, y_rec, params, *, tm=None):
    """Mirrors WavLMLoss.forward: sum over hidden states of mean|er - eg|."""
    B, S = wav.shape
    T = S // FRAME
    M = B * T
    frames_w = wav[:, : T * FRAME].reshape(M, FRAME)
    frames_r = y_rec[:, : T * FRAME].reshape(M, FRAME)
    # with torch.no_grad(): the WavLM path for `wav` carries no gradient.
    frames_w = jax.lax.stop_gradient(frames_w)

    if tm is None:
        tm = next(c for c in (256, 128, 64, 32, 16, 8) if M % c == 0)
    assert M % tm == 0 and tm % 8 == 0, (M, tm)
    n_tiles = M // tm

    # Zero-pad frozen weights to lane-dense HP=128; padded columns/rows stay
    # exactly zero through every layer, so the accumulated loss is unchanged.
    wf = jnp.pad(params["w_feat"], ((0, 0), (0, HP - HIDDEN)))
    bf = jnp.pad(params["b_feat"], (0, HP - HIDDEN)).reshape(1, HP)
    wl = jnp.stack([jnp.pad(w, ((0, HP - HIDDEN), (0, HP - HIDDEN)))
                    for w in params["w_layers"]])
    bl = jnp.stack([jnp.pad(b, (0, HP - HIDDEN)).reshape(1, HP)
                    for b in params["b_layers"]])

    flops = 2 * (2 * M * FRAME * HP + NUM_LAYERS * 2 * M * HP * HP)
    transcendentals = 2 * NUM_LAYERS * M * HP
    bytes_accessed = 4 * (2 * M * FRAME + wf.size + bf.size + wl.size
                          + bl.size + n_tiles * 8 * HP)

    partials = pl.pallas_call(
        _fused_wavlm_loss_kernel,
        out_shape=jax.ShapeDtypeStruct((n_tiles * 8, HP), jnp.float32),
        grid_spec=pltpu.PrefetchScalarGridSpec(
            num_scalar_prefetch=0,
            grid=(n_tiles,),
            in_specs=[
                pl.BlockSpec((tm, FRAME), lambda i: (i, 0)),        # wav frames
                pl.BlockSpec((tm, FRAME), lambda i: (i, 0)),        # y_rec frames
                pl.BlockSpec((FRAME, HP), lambda i: (0, 0)),        # w_feat
                pl.BlockSpec((1, HP), lambda i: (0, 0)),            # b_feat
                pl.BlockSpec((NUM_LAYERS, HP, HP), lambda i: (0, 0, 0)),  # w_layers
                pl.BlockSpec((NUM_LAYERS, 1, HP), lambda i: (0, 0, 0)),   # b_layers
            ],
            out_specs=pl.BlockSpec((8, HP), lambda i: (i, 0)),      # per-tile partials
        ),
        compiler_params=pltpu.CompilerParams(
            dimension_semantics=("parallel",),
            vmem_limit_bytes=32 * 1024 * 1024,
        ),
        cost_estimate=pl.CostEstimate(
            flops=flops,
            transcendentals=transcendentals,
            bytes_accessed=bytes_accessed,
        ),
    )(frames_w, frames_r, wf, bf, wl, bl)

    # every layer has the same element count, so sum of per-layer means
    # == grand sum / (M * HIDDEN).  Padded lanes contribute exactly 0.
    floss = jnp.sum(partials) / (M * HIDDEN)
    return jnp.mean(floss)   # .mean() on a scalar, as in the PyTorch reference


# ----------------------------------------------------------------------------
# Frozen surrogate parameter init (deterministic)
# ----------------------------------------------------------------------------
def init_params(key):
    keys = jax.random.split(key, 2 + 2 * NUM_LAYERS)
    params = {
        "w_feat": jax.random.normal(keys[0], (FRAME, HIDDEN), jnp.float32) * 0.1,
        "b_feat": jax.random.normal(keys[1], (HIDDEN,), jnp.float32) * 0.01,
        "w_layers": [],
        "b_layers": [],
    }
    for i in range(NUM_LAYERS):
        params["w_layers"].append(
            jax.random.normal(keys[2 + 2 * i], (HIDDEN, HIDDEN), jnp.float32) * 0.1)
        params["b_layers"].append(
            jax.random.normal(keys[3 + 2 * i], (HIDDEN,), jnp.float32) * 0.01)
    return params


# ----------------------------------------------------------------------------
if __name__ == "__main__":
    key = jax.random.PRNGKey(0)
    k_params, k_wav, k_rec = jax.random.split(key, 3)

    params = init_params(k_params)

    B, S = 2, 1024                    # batch=2, 1024 samples -> M = B*T = 128 rows
    wav = jax.random.normal(k_wav, (B, S), jnp.float32)
    y_rec = jax.random.normal(k_rec, (B, S), jnp.float32)

    # tm=64 -> grid of 2 M-tiles (exercises tiling + parallel axis)
    loss = jax.jit(lambda a, b, p: wavlm_loss_forward(a, b, p, tm=64))(
        wav, y_rec, params)
    jax.block_until_ready(loss)

    # pure-JAX reference (unpadded) for a lightweight sanity check
    def ref_forward(wav, y_rec, params):
        def embed(x):
            Bx, Sx = x.shape
            T = Sx // FRAME
            frames = x[:, : T * FRAME].reshape(Bx * T, FRAME)
            h = frames @ params["w_feat"] + params["b_feat"]
            hs = [h]
            for w, b in zip(params["w_layers"], params["b_layers"]):
                h = jax.nn.gelu(h @ w + b, approximate=True)
                hs.append(h)
            return hs
        er, eg = embed(wav), embed(y_rec)
        return sum(jnp.mean(jnp.abs(a - b)) for a, b in zip(er, eg))

    ref = ref_forward(wav, y_rec, params)
    assert jnp.allclose(loss, ref, atol=1e-4, rtol=1e-4), (loss, ref)

    print("KERNEL_OK")
</pallas_src>

<mosaic_0001>
module attributes {stable_mosaic.version = 11 : i64} {
  func.func @_fused_wavlm_loss_kernel(%arg0: i32, %arg1: memref<64x16xf32, #tpu.memory_space<vmem>>, %arg2: memref<64x16xf32, #tpu.memory_space<vmem>>, %arg3: memref<16x128xf32, #tpu.memory_space<vmem>>, %arg4: memref<1x128xf32, #tpu.memory_space<vmem>>, %arg5: memref<3x128x128xf32, #tpu.memory_space<vmem>>, %arg6: memref<3x1x128xf32, #tpu.memory_space<vmem>>, %arg7: memref<8x128xf32, #tpu.memory_space<vmem>>) attributes {dimension_semantics = [#tpu.dimension_semantics<parallel>], iteration_bounds = array<i64: 2>, scalar_prefetch = 0 : i64, scratch_operands = 0 : i64, tpu.core_type = #tpu.core_type<tc>, window_params = [{transform_indices = @transform_0, window_bounds = array<i64: 64, 16>}, {transform_indices = @transform_1, window_bounds = array<i64: 64, 16>}, {pipeline_mode = #tpu.pipeline_mode<synchronous>, transform_indices = @transform_2, window_bounds = array<i64: 16, 128>}, {pipeline_mode = #tpu.pipeline_mode<synchronous>, transform_indices = @transform_3, window_bounds = array<i64: 1, 128>}, {pipeline_mode = #tpu.pipeline_mode<synchronous>, transform_indices = @transform_4, window_bounds = array<i64: 3, 128, 128>}, {pipeline_mode = #tpu.pipeline_mode<synchronous>, transform_indices = @transform_5, window_bounds = array<i64: 3, 1, 128>}, {transform_indices = @transform_6, window_bounds = array<i64: 8, 128>}]} {
    %c0 = arith.constant 0 : index
    %c0_0 = arith.constant 0 : index
    %0 = vector.load %arg1[%c0, %c0_0] : memref<64x16xf32, #tpu.memory_space<vmem>>, vector<64x16xf32>
    %c0_1 = arith.constant 0 : index
    %c0_2 = arith.constant 0 : index
    %1 = vector.load %arg3[%c0_1, %c0_2] : memref<16x128xf32, #tpu.memory_space<vmem>>, vector<16x128xf32>
    %cst = arith.constant dense<0.000000e+00> : vector<64x128xf32>
    %2 = tpu.matmul %0, %1, %cst {dimension_numbers = #tpu.dot_dimension_numbers<[1], [0], [0], [1], [0, 0, 1, 1], [], []>} : vector<64x16xf32>, vector<16x128xf32>, vector<64x128xf32> -> vector<64x128xf32>
    %c0_3 = arith.constant 0 : index
    %c0_4 = arith.constant 0 : index
    %3 = vector.load %arg4[%c0_3, %c0_4] : memref<1x128xf32, #tpu.memory_space<vmem>>, vector<1x128xf32>
    %4 = vector.broadcast %3 : vector<1x128xf32> to vector<64x128xf32>
    %5 = arith.addf %2, %4 : vector<64x128xf32>
    %c0_5 = arith.constant 0 : index
    %c0_6 = arith.constant 0 : index
    %6 = vector.load %arg2[%c0_5, %c0_6] : memref<64x16xf32, #tpu.memory_space<vmem>>, vector<64x16xf32>
    %c0_7 = arith.constant 0 : index
    %c0_8 = arith.constant 0 : index
    %7 = vector.load %arg3[%c0_7, %c0_8] : memref<16x128xf32, #tpu.memory_space<vmem>>, vector<16x128xf32>
    %cst_9 = arith.constant dense<0.000000e+00> : vector<64x128xf32>
    %8 = tpu.matmul %6, %7, %cst_9 {dimension_numbers = #tpu.dot_dimension_numbers<[1], [0], [0], [1], [0, 0, 1, 1], [], []>} : vector<64x16xf32>, vector<16x128xf32>, vector<64x128xf32> -> vector<64x128xf32>
    %c0_10 = arith.constant 0 : index
    %c0_11 = arith.constant 0 : index
    %9 = vector.load %arg4[%c0_10, %c0_11] : memref<1x128xf32, #tpu.memory_space<vmem>>, vector<1x128xf32>
    %10 = vector.broadcast %9 : vector<1x128xf32> to vector<64x128xf32>
    %11 = arith.addf %8, %10 : vector<64x128xf32>
    %12 = arith.subf %5, %11 : vector<64x128xf32>
    %13 = math.absf %12 : vector<64x128xf32>
    %c0_12 = arith.constant 0 : index
    %c0_13 = arith.constant 0 : index
    %c0_14 = arith.constant 0 : index
    %14 = vector.load %arg5[%c0_12, %c0_13, %c0_14] : memref<3x128x128xf32, #tpu.memory_space<vmem>>, vector<1x128x128xf32>
    %15 = vector.shape_cast %14 : vector<1x128x128xf32> to vector<128x128xf32>
    %c0_15 = arith.constant 0 : index
    %c0_16 = arith.constant 0 : index
    %c0_17 = arith.constant 0 : index
    %16 = vector.load %arg6[%c0_15, %c0_16, %c0_17] : memref<3x1x128xf32, #tpu.memory_space<vmem>>, vector<1x1x128xf32>
    %17 = vector.shape_cast %16 : vector<1x1x128xf32> to vector<1x128xf32>
    %cst_18 = arith.constant dense<0.000000e+00> : vector<64x128xf32>
    %18 = tpu.matmul %5, %15, %cst_18 {dimension_numbers = #tpu.dot_dimension_numbers<[1], [0], [0], [1], [0, 0, 1, 1], [], []>} : vector<64x128xf32>, vector<128x128xf32>, vector<64x128xf32> -> vector<64x128xf32>
    %19 = vector.broadcast %17 : vector<1x128xf32> to vector<64x128xf32>
    %20 = arith.addf %18, %19 : vector<64x128xf32>
    %21 = arith.mulf %20, %20 : vector<64x128xf32>
    %22 = arith.mulf %20, %21 : vector<64x128xf32>
    %cst_19 = arith.constant 4.471500e-02 : f32
    %23 = vector.broadcast %cst_19 : f32 to vector<64x128xf32>
    %24 = arith.mulf %23, %22 : vector<64x128xf32>
    %25 = arith.addf %20, %24 : vector<64x128xf32>
    %cst_20 = arith.constant 0.797884583 : f32
    %26 = vector.broadcast %cst_20 : f32 to vector<64x128xf32>
    %27 = arith.mulf %26, %25 : vector<64x128xf32>
    %28 = math.tanh %27 : vector<64x128xf32>
    %cst_21 = arith.constant 1.000000e+00 : f32
    %29 = vector.broadcast %cst_21 : f32 to vector<64x128xf32>
    %30 = arith.addf %29, %28 : vector<64x128xf32>
    %cst_22 = arith.constant 5.000000e-01 : f32
    %31 = vector.broadcast %cst_22 : f32 to vector<64x128xf32>
    %32 = arith.mulf %31, %30 : vector<64x128xf32>
    %33 = arith.mulf %20, %32 : vector<64x128xf32>
    %cst_23 = arith.constant dense<0.000000e+00> : vector<64x128xf32>
    %34 = tpu.matmul %11, %15, %cst_23 {dimension_numbers = #tpu.dot_dimension_numbers<[1], [0], [0], [1], [0, 0, 1, 1], [], []>} : vector<64x128xf32>, vector<128x128xf32>, vector<64x128xf32> -> vector<64x128xf32>
    %35 = vector.broadcast %17 : vector<1x128xf32> to vector<64x128xf32>
    %36 = arith.addf %34, %35 : vector<64x128xf32>
    %37 = arith.mulf %36, %36 : vector<64x128xf32>
    %38 = arith.mulf %36, %37 : vector<64x128xf32>
    %cst_24 = arith.constant 4.471500e-02 : f32
    %39 = vector.broadcast %cst_24 : f32 to vector<64x128xf32>
    %40 = arith.mulf %39, %38 : vector<64x128xf32>
    %41 = arith.addf %36, %40 : vector<64x128xf32>
    %cst_25 = arith.constant 0.797884583 : f32
    %42 = vector.broadcast %cst_25 : f32 to vector<64x128xf32>
    %43 = arith.mulf %42, %41 : vector<64x128xf32>
    %44 = math.tanh %43 : vector<64x128xf32>
    %cst_26 = arith.constant 1.000000e+00 : f32
    %45 = vector.broadcast %cst_26 : f32 to vector<64x128xf32>
    %46 = arith.addf %45, %44 : vector<64x128xf32>
    %cst_27 = arith.constant 5.000000e-01 : f32
    %47 = vector.broadcast %cst_27 : f32 to vector<64x128xf32>
    %48 = arith.mulf %47, %46 : vector<64x128xf32>
    %49 = arith.mulf %36, %48 : vector<64x128xf32>
    %50 = arith.subf %33, %49 : vector<64x128xf32>
    %51 = math.absf %50 : vector<64x128xf32>
    %52 = arith.addf %13, %51 : vector<64x128xf32>
    %c1 = arith.constant 1 : index
    %c0_28 = arith.constant 0 : index
    %c0_29 = arith.constant 0 : index
    %53 = vector.load %arg5[%c1, %c0_28, %c0_29] : memref<3x128x128xf32, #tpu.memory_space<vmem>>, vector<1x128x128xf32>
    %54 = vector.shape_cast %53 : vector<1x128x128xf32> to vector<128x128xf32>
    %c1_30 = arith.constant 1 : index
    %c0_31 = arith.constant 0 : index
    %c0_32 = arith.constant 0 : index
    %55 = vector.load %arg6[%c1_30, %c0_31, %c0_32] : memref<3x1x128xf32, #tpu.memory_space<vmem>>, vector<1x1x128xf32>
    %56 = vector.shape_cast %55 : vector<1x1x128xf32> to vector<1x128xf32>
    %cst_33 = arith.constant dense<0.000000e+00> : vector<64x128xf32>
    %57 = tpu.matmul %33, %54, %cst_33 {dimension_numbers = #tpu.dot_dimension_numbers<[1], [0], [0], [1], [0, 0, 1, 1], [], []>} : vector<64x128xf32>, vector<128x128xf32>, vector<64x128xf32> -> vector<64x128xf32>
    %58 = vector.broadcast %56 : vector<1x128xf32> to vector<64x128xf32>
    %59 = arith.addf %57, %58 : vector<64x128xf32>
    %60 = arith.mulf %59, %59 : vector<64x128xf32>
    %61 = arith.mulf %59, %60 : vector<64x128xf32>
    %cst_34 = arith.constant 4.471500e-02 : f32
    %62 = vector.broadcast %cst_34 : f32 to vector<64x128xf32>
    %63 = arith.mulf %62, %61 : vector<64x128xf32>
    %64 = arith.addf %59, %63 : vector<64x128xf32>
    %cst_35 = arith.constant 0.797884583 : f32
    %65 = vector.broadcast %cst_35 : f32 to vector<64x128xf32>
    %66 = arith.mulf %65, %64 : vector<64x128xf32>
    %67 = math.tanh %66 : vector<64x128xf32>
    %cst_36 = arith.constant 1.000000e+00 : f32
    %68 = vector.broadcast %cst_36 : f32 to vector<64x128xf32>
    %69 = arith.addf %68, %67 : vector<64x128xf32>
    %cst_37 = arith.constant 5.000000e-01 : f32
    %70 = vector.broadcast %cst_37 : f32 to vector<64x128xf32>
    %71 = arith.mulf %70, %69 : vector<64x128xf32>
    %72 = arith.mulf %59, %71 : vector<64x128xf32>
    %cst_38 = arith.constant dense<0.000000e+00> : vector<64x128xf32>
    %73 = tpu.matmul %49, %54, %cst_38 {dimension_numbers = #tpu.dot_dimension_numbers<[1], [0], [0], [1], [0, 0, 1, 1], [], []>} : vector<64x128xf32>, vector<128x128xf32>, vector<64x128xf32> -> vector<64x128xf32>
    %74 = vector.broadcast %56 : vector<1x128xf32> to vector<64x128xf32>
    %75 = arith.addf %73, %74 : vector<64x128xf32>
    %76 = arith.mulf %75, %75 : vector<64x128xf32>
    %77 = arith.mulf %75, %76 : vector<64x128xf32>
    %cst_39 = arith.constant 4.471500e-02 : f32
    %78 = vector.broadcast %cst_39 : f32 to vector<64x128xf32>
    %79 = arith.mulf %78, %77 : vector<64x128xf32>
    %80 = arith.addf %75, %79 : vector<64x128xf32>
    %cst_40 = arith.constant 0.797884583 : f32
    %81 = vector.broadcast %cst_40 : f32 to vector<64x128xf32>
    %82 = arith.mulf %81, %80 : vector<64x128xf32>
    %83 = math.tanh %82 : vector<64x128xf32>
    %cst_41 = arith.constant 1.000000e+00 : f32
    %84 = vector.broadcast %cst_41 : f32 to vector<64x128xf32>
    %85 = arith.addf %84, %83 : vector<64x128xf32>
    %cst_42 = arith.constant 5.000000e-01 : f32
    %86 = vector.broadcast %cst_42 : f32 to vector<64x128xf32>
    %87 = arith.mulf %86, %85 : vector<64x128xf32>
    %88 = arith.mulf %75, %87 : vector<64x128xf32>
    %89 = arith.subf %72, %88 : vector<64x128xf32>
    %90 = math.absf %89 : vector<64x128xf32>
    %91 = arith.addf %52, %90 : vector<64x128xf32>
    %c2 = arith.constant 2 : index
    %c0_43 = arith.constant 0 : index
    %c0_44 = arith.constant 0 : index
    %92 = vector.load %arg5[%c2, %c0_43, %c0_44] : memref<3x128x128xf32, #tpu.memory_space<vmem>>, vector<1x128x128xf32>
    %93 = vector.shape_cast %92 : vector<1x128x128xf32> to vector<128x128xf32>
    %c2_45 = arith.constant 2 : index
    %c0_46 = arith.constant 0 : index
    %c0_47 = arith.constant 0 : index
    %94 = vector.load %arg6[%c2_45, %c0_46, %c0_47] : memref<3x1x128xf32, #tpu.memory_space<vmem>>, vector<1x1x128xf32>
    %95 = vector.shape_cast %94 : vector<1x1x128xf32> to vector<1x128xf32>
    %cst_48 = arith.constant dense<0.000000e+00> : vector<64x128xf32>
    %96 = tpu.matmul %72, %93, %cst_48 {dimension_numbers = #tpu.dot_dimension_numbers<[1], [0], [0], [1], [0, 0, 1, 1], [], []>} : vector<64x128xf32>, vector<128x128xf32>, vector<64x128xf32> -> vector<64x128xf32>
    %97 = vector.broadcast %95 : vector<1x128xf32> to vector<64x128xf32>
    %98 = arith.addf %96, %97 : vector<64x128xf32>
    %99 = arith.mulf %98, %98 : vector<64x128xf32>
    %100 = arith.mulf %98, %99 : vector<64x128xf32>
    %cst_49 = arith.constant 4.471500e-02 : f32
    %101 = vector.broadcast %cst_49 : f32 to vector<64x128xf32>
    %102 = arith.mulf %101, %100 : vector<64x128xf32>
    %103 = arith.addf %98, %102 : vector<64x128xf32>
    %cst_50 = arith.constant 0.797884583 : f32
    %104 = vector.broadcast %cst_50 : f32 to vector<64x128xf32>
    %105 = arith.mulf %104, %103 : vector<64x128xf32>
    %106 = math.tanh %105 : vector<64x128xf32>
    %cst_51 = arith.constant 1.000000e+00 : f32
    %107 = vector.broadcast %cst_51 : f32 to vector<64x128xf32>
    %108 = arith.addf %107, %106 : vector<64x128xf32>
    %cst_52 = arith.constant 5.000000e-01 : f32
    %109 = vector.broadcast %cst_52 : f32 to vector<64x128xf32>
    %110 = arith.mulf %109, %108 : vector<64x128xf32>
    %111 = arith.mulf %98, %110 : vector<64x128xf32>
    %cst_53 = arith.constant dense<0.000000e+00> : vector<64x128xf32>
    %112 = tpu.matmul %88, %93, %cst_53 {dimension_numbers = #tpu.dot_dimension_numbers<[1], [0], [0], [1], [0, 0, 1, 1], [], []>} : vector<64x128xf32>, vector<128x128xf32>, vector<64x128xf32> -> vector<64x128xf32>
    %113 = vector.broadcast %95 : vector<1x128xf32> to vector<64x128xf32>
    %114 = arith.addf %112, %113 : vector<64x128xf32>
    %115 = arith.mulf %114, %114 : vector<64x128xf32>
    %116 = arith.mulf %114, %115 : vector<64x128xf32>
    %cst_54 = arith.constant 4.471500e-02 : f32
    %117 = vector.broadcast %cst_54 : f32 to vector<64x128xf32>
    %118 = arith.mulf %117, %116 : vector<64x128xf32>
    %119 = arith.addf %114, %118 : vector<64x128xf32>
    %cst_55 = arith.constant 0.797884583 : f32
    %120 = vector.broadcast %cst_55 : f32 to vector<64x128xf32>
    %121 = arith.mulf %120, %119 : vector<64x128xf32>
    %122 = math.tanh %121 : vector<64x128xf32>
    %cst_56 = arith.constant 1.000000e+00 : f32
    %123 = vector.broadcast %cst_56 : f32 to vector<64x128xf32>
    %124 = arith.addf %123, %122 : vector<64x128xf32>
    %cst_57 = arith.constant 5.000000e-01 : f32
    %125 = vector.broadcast %cst_57 : f32 to vector<64x128xf32>
    %126 = arith.mulf %125, %124 : vector<64x128xf32>
    %127 = arith.mulf %114, %126 : vector<64x128xf32>
    %128 = arith.subf %111, %127 : vector<64x128xf32>
    %129 = math.absf %128 : vector<64x128xf32>
    %130 = arith.addf %91, %129 : vector<64x128xf32>
    %131 = vector.shape_cast %130 : vector<64x128xf32> to vector<8x8x128xf32>
    %cst_58 = arith.constant dense<0.000000e+00> : vector<8x128xf32>
    %132 = vector.multi_reduction <add>, %131, %cst_58 [0] : vector<8x8x128xf32> to vector<8x128xf32>
    %c0_59 = arith.constant 0 : index
    %c0_60 = arith.constant 0 : index
    %133 = vector.load %arg7[%c0_59, %c0_60] : memref<8x128xf32, #tpu.memory_space<vmem>>, vector<8x128xf32>
    tpu.vector_store %arg7[%c0_59, %c0_60], %132 {strides = array<i32>} : memref<8x128xf32, #tpu.memory_space<vmem>>, vector<8x128xf32>,
    return
  }
  func.func @transform_0(%arg0: i32) -> (i32, i32) {
    %c0_i32 = arith.constant 0 : i32
    %c0_i32_0 = arith.constant 0 : i32
    return %arg0, %c0_i32 : i32, i32
  }
  func.func @transform_1(%arg0: i32) -> (i32, i32) {
    %c0_i32 = arith.constant 0 : i32
    %c0_i32_0 = arith.constant 0 : i32
    return %arg0, %c0_i32 : i32, i32
  }
  func.func @transform_2(%arg0: i32) -> (i32, i32) {
    %c0_i32 = arith.constant 0 : i32
    %c0_i32_0 = arith.constant 0 : i32
    %c0_i32_1 = arith.constant 0 : i32
    return %c0_i32, %c0_i32_0 : i32, i32
  }
  func.func @transform_3(%arg0: i32) -> (i32, i32) {
    %c0_i32 = arith.constant 0 : i32
    %c0_i32_0 = arith.constant 0 : i32
    %c0_i32_1 = arith.constant 0 : i32
    return %c0_i32, %c0_i32_0 : i32, i32
  }
  func.func @transform_4(%arg0: i32) -> (i32, i32, i32) {
    %c0_i32 = arith.constant 0 : i32
    %c0_i32_0 = arith.constant 0 : i32
    %c0_i32_1 = arith.constant 0 : i32
    %c0_i32_2 = arith.constant 0 : i32
    return %c0_i32, %c0_i32_0, %c0_i32_1 : i32, i32, i32
  }
  func.func @transform_5(%arg0: i32) -> (i32, i32, i32) {
    %c0_i32 = arith.constant 0 : i32
    %c0_i32_0 = arith.constant 0 : i32
    %c0_i32_1 = arith.constant 0 : i32
    %c0_i32_2 = arith.constant 0 : i32
    return %c0_i32, %c0_i32_0, %c0_i32_1 : i32, i32, i32
  }
  func.func @transform_6(%arg0: i32) -> (i32, i32) {
    %c0_i32 = arith.constant 0 : i32
    %c0_i32_0 = arith.constant 0 : i32
    return %arg0, %c0_i32 : i32, i32
  }
}

</mosaic_0001>

<llo_original>
// kernel: _lambda_.1
$region0: #{_lambda_.1}
  #allocation0 [shape = 'u32[]', space=smem, size = 0x4, offset = 0x4, fixed_abs, tag = 'smem constant byte address 0x4 - core index']
  #allocation1 [shape = 'u32[72,128]{1,0:T(1,128)}', space=vmem, size = 0x9000, scoped, tag = 'internal scratch']
  %s0 = inlined_call_operand.vmem [shape: f32[128,16], index: 0, kind: input, shape index: {}]
  %s1 = inlined_call_operand.vmem [shape: f32[128,16], index: 1, kind: input, shape index: {}]
  %s2 = inlined_call_operand.vmem [shape: f32[16,128], index: 2, kind: input, shape index: {}]
  %s3 = inlined_call_operand.vmem [shape: f32[1,128], index: 3, kind: input, shape index: {}]
  %s4 = inlined_call_operand.vmem [shape: f32[3,128,128], index: 4, kind: input, shape index: {}]
  %s5 = inlined_call_operand.vmem [shape: f32[3,1,128], index: 5, kind: input, shape index: {}]
  %s6 = inlined_call_operand.vmem [shape: f32[16,128], index: 6, kind: output, shape index: {}]
  %s7 = sld [smem:[#allocation0]]
  $region57: #{_lambda_.1} parent=0
    _
  %s9 = ssub.s32 1, %s7
  %s10 = scalar_select 0, %s9, %s7
  loop: start=0, step=1, limit=4
  $region2: #{_lambda_.1} parent=0 // loop_pre_header
    _
  $region3: #{_lambda_.1} parent=0 // loop_header
    %s12 = sphi 0, %s16
    %p13 = scmp.ge.s32.totalorder %s12, 4
    %s22 = sphi 0, %s24
    %s25 = sphi 0, %s22
    %s26 = sphi 0, %s25
    %s42 = sphi 0, %s26
    %s48 = sphi 0, %s50
    %s51 = sphi 0, %s48
    %s52 = sphi 0, %s51
    %s68 = sphi 0, %s52
    %s72 = sphi 0, %s72
    %s74 = sphi 0, %s72
    %s75 = sphi 0, %s74
    %s89 = sphi 0, %s75
    %s93 = sphi 0, %s93
    %s95 = sphi 0, %s93
    %s96 = sphi 0, %s95
    %s110 = sphi 0, %s96
    %s114 = sphi 0, %s114
    %s116 = sphi 0, %s114
    %s117 = sphi 0, %s116
    %s131 = sphi 0, %s117
    %s135 = sphi 0, %s135
    %s137 = sphi 0, %s135
    %s138 = sphi 0, %s137
    %s152 = sphi 0, %s138
    %s158 = sphi 0, %s160
    %s161 = sphi 0, %s158
    %s162 = sphi 0, %s161
    %s178 = sphi 0, %s162
  $region4: #{_lambda_.1} parent=0 // loop_header_branch
    %15 = sbr.rel (%p13) target = $region8
  $region5: #{_lambda_.1} parent=0 // loop_body
    %s17 = ssub.s32 %s12, 1
    %s18 = ssub.s32 %s12, 2
    %s19 = sadd.s32 %s12, 1
    %s20 = ssub.s32 %s12, %s19
    %p21 = scmp.eq.s32.totalorder %s20, 0
    %s23 = sadd.s32 %s22, 1
    %s24 = scalar_select %p21, %s22, %s23
    %p27 = pneg %p21
    %p28 = scmp.eq.s32.totalorder %s12, 1
    %p29 = por %p27, %p28
    %p30 = scmp.ne.s32.totalorder %s22, %s25
    %p31 = scmp.eq.s32.totalorder %s12, 0
    %p32 = por %p30, %p31
    %p33 = scmp.ne.s32.totalorder %s22, %s25
    %p34 = scmp.eq.s32.totalorder %s17, 1
    %p35 = por %p33, %p34
    %p36 = scmp.ne.s32.totalorder %s25, %s26
    %p37 = scmp.eq.s32.totalorder %s17, 0
    %p38 = por %p36, %p37
    %p39 = scmp.ne.s32.totalorder %s25, %s26
    %p40 = scmp.eq.s32.totalorder %s18, 1
    %p41 = por %p39, %p40
    %p43 = scmp.ne.s32.totalorder %s26, %s42
    %p44 = scmp.eq.s32.totalorder %s18, 0
    %p45 = por %p43, %p44
    %s46 = ssub.s32 %s12, %s19
    %p47 = scmp.eq.s32.totalorder %s46, 0
    %s49 = sadd.s32 %s48, 1
    %s50 = scalar_select %p47, %s48, %s49
    %p53 = pneg %p47
    %p54 = scmp.eq.s32.totalorder %s12, 1
    %p55 = por %p53, %p54
    %p56 = scmp.ne.s32.totalorder %s48, %s51
    %p57 = scmp.eq.s32.totalorder %s12, 0
    %p58 = por %p56, %p57
    %p59 = scmp.ne.s32.totalorder %s48, %s51
    %p60 = scmp.eq.s32.totalorder %s17, 1
    %p61 = por %p59, %p60
    %p62 = scmp.ne.s32.totalorder %s51, %s52
    %p63 = scmp.eq.s32.totalorder %s17, 0
    %p64 = por %p62, %p63
    %p65 = scmp.ne.s32.totalorder %s51, %s52
    %p66 = scmp.eq.s32.totalorder %s18, 1
    %p67 = por %p65, %p66
    %p69 = scmp.ne.s32.totalorder %s52, %s68
    %p70 = scmp.eq.s32.totalorder %s18, 0
    %p71 = por %p69, %p70
    %s73 = sadd.s32 %s72, 1
    %p76 = scmp.eq.s32.totalorder %s12, 1
    %p77 = scmp.ne.s32.totalorder %s72, %s74
    %p78 = scmp.eq.s32.totalorder %s12, 0
    %p79 = por %p77, %p78
    %p80 = scmp.ne.s32.totalorder %s72, %s74
    %p81 = scmp.eq.s32.totalorder %s17, 1
    %p82 = por %p80, %p81
    %p83 = scmp.ne.s32.totalorder %s74, %s75
    %p84 = scmp.eq.s32.totalorder %s17, 0
    %p85 = por %p83, %p84
    %p86 = scmp.ne.s32.totalorder %s74, %s75
    %p87 = scmp.eq.s32.totalorder %s18, 1
    %p88 = por %p86, %p87
    %p90 = scmp.ne.s32.totalorder %s75, %s89
    %p91 = scmp.eq.s32.totalorder %s18, 0
    %p92 = por %p90, %p91
    %s94 = sadd.s32 %s93, 1
    %p97 = scmp.eq.s32.totalorder %s12, 1
    %p98 = scmp.ne.s32.totalorder %s93, %s95
    %p99 = scmp.eq.s32.totalorder %s12, 0
    %p100 = por %p98, %p99
    %p101 = scmp.ne.s32.totalorder %s93, %s95
    %p102 = scmp.eq.s32.totalorder %s17, 1
    %p103 = por %p101, %p102
    %p104 = scmp.ne.s32.totalorder %s95, %s96
    %p105 = scmp.eq.s32.totalorder %s17, 0
    %p106 = por %p104, %p105
    %p107 = scmp.ne.s32.totalorder %s95, %s96
    %p108 = scmp.eq.s32.totalorder %s18, 1
    %p109 = por %p107, %p108
    %p111 = scmp.ne.s32.totalorder %s96, %s110
    %p112 = scmp.eq.s32.totalorder %s18, 0
    %p113 = por %p111, %p112
    %s115 = sadd.s32 %s114, 1
    %p118 = scmp.eq.s32.totalorder %s12, 1
    %p119 = scmp.ne.s32.totalorder %s114, %s116
    %p120 = scmp.eq.s32.totalorder %s12, 0
    %p121 = por %p119, %p120
    %p122 = scmp.ne.s32.totalorder %s114, %s116
    %p123 = scmp.eq.s32.totalorder %s17, 1
    %p124 = por %p122, %p123
    %p125 = scmp.ne.s32.totalorder %s116, %s117
    %p126 = scmp.eq.s32.totalorder %s17, 0
    %p127 = por %p125, %p126
    %p128 = scmp.ne.s32.totalorder %s116, %s117
    %p129 = scmp.eq.s32.totalorder %s18, 1
    %p130 = por %p128, %p129
    %p132 = scmp.ne.s32.totalorder %s117, %s131
    %p133 = scmp.eq.s32.totalorder %s18, 0
    %p134 = por %p132, %p133
    %s136 = sadd.s32 %s135, 1
    %p139 = scmp.eq.s32.totalorder %s12, 1
    %p140 = scmp.ne.s32.totalorder %s135, %s137
    %p141 = scmp.eq.s32.totalorder %s12, 0
    %p142 = por %p140, %p141
    %p143 = scmp.ne.s32.totalorder %s135, %s137
    %p144 = scmp.eq.s32.totalorder %s17, 1
    %p145 = por %p143, %p144
    %p146 = scmp.ne.s32.totalorder %s137, %s138
    %p147 = scmp.eq.s32.totalorder %s17, 0
    %p148 = por %p146, %p147
    %p149 = scmp.ne.s32.totalorder %s137, %s138
    %p150 = scmp.eq.s32.totalorder %s18, 1
    %p151 = por %p149, %p150
    %p153 = scmp.ne.s32.totalorder %s138, %s152
    %p154 = scmp.eq.s32.totalorder %s18, 0
    %p155 = por %p153, %p154
    %s156 = ssub.s32 %s12, %s19
    %p157 = scmp.eq.s32.totalorder %s156, 0
    %s159 = sadd.s32 %s158, 1
    %s160 = scalar_select %p157, %s158, %s159
    %p163 = pneg %p157
    %p164 = scmp.eq.s32.totalorder %s12, 1
    %p165 = por %p163, %p164
    %p166 = scmp.ne.s32.totalorder %s158, %s161
    %p167 = scmp.eq.s32.totalorder %s12, 0
    %p168 = por %p166, %p167
    %p169 = scmp.ne.s32.totalorder %s158, %s161
    %p170 = scmp.eq.s32.totalorder %s17, 1
    %p171 = por %p169, %p170
    %p172 = scmp.ne.s32.totalorder %s161, %s162
    %p173 = scmp.eq.s32.totalorder %s17, 0
    %p174 = por %p172, %p173
    %p175 = scmp.ne.s32.totalorder %s161, %s162
    %p176 = scmp.eq.s32.totalorder %s18, 1
    %p177 = por %p175, %p176
    %p179 = scmp.ne.s32.totalorder %s162, %s178
    %p180 = scmp.eq.s32.totalorder %s18, 0
    %p181 = por %p179, %p180
    %p182 = scmp.le.s32.totalorder 1, %s12
    %p183 = scmp.lt.s32.totalorder %s12, 3
    %p184 = pnand %p182, %p183
    %p185 = pneg %p184
    // Predicated region
    $region9: #{_lambda_.1} parent=5 // pred_check
      _
    $region10: #{_lambda_.1} parent=5 // pred_check_branch
      %187 = sbr.rel (%p184) target = $region12
    $region11: #{_lambda_.1} parent=5 // pred_region
      %s188 = ssub.s32 %s12, 1
      // Predicated region
      $region13: #{_lambda_.1} parent=11 // pred_check
        %p189 = pneg %p85
      $region14: #{_lambda_.1} parent=11 // pred_check_branch
        %191 = sbr.rel (%p189) target = $region16
      $region15: #{_lambda_.1} parent=11 // pred_region
        _
      $region16: #{_lambda_.1} parent=11 // pred_fallthru
        _
      // Predicated region
      $region17: #{_lambda_.1} parent=11 // pred_check
        %p192 = pneg %p106
      $region18: #{_lambda_.1} parent=11 // pred_check_branch
        %194 = sbr.rel (%p192) target = $region20
      $region19: #{_lambda_.1} parent=11 // pred_region
        _
      $region20: #{_lambda_.1} parent=11 // pred_fallthru
        _
      // Predicated region
      $region21: #{_lambda_.1} parent=11 // pred_check
        %p195 = pneg %p127
      $region22: #{_lambda_.1} parent=11 // pred_check_branch
        %197 = sbr.rel (%p195) target = $region24
      $region23: #{_lambda_.1} parent=11 // pred_region
        _
      $region24: #{_lambda_.1} parent=11 // pred_fallthru
        _
      // Predicated region
      $region25: #{_lambda_.1} parent=11 // pred_check
        %p198 = pneg %p148
      $region26: #{_lambda_.1} parent=11 // pred_check_branch
        %200 = sbr.rel (%p198) target = $region28
      $region27: #{_lambda_.1} parent=11 // pred_region
        _
      $region28: #{_lambda_.1} parent=11 // pred_fallthru
        _
    $region12: #{_lambda_.1} parent=5 // pred_fallthru
      _
    %p201 = scmp.lt.s32.totalorder %s12, 2
    // Predicated region
    $region29: #{_lambda_.1} parent=5 // pred_check
      %p202 = pneg %p201
    $region30: #{_lambda_.1} parent=5 // pred_check_branch
      %204 = sbr.rel (%p202) target = $region32
    $region31: #{_lambda_.1} parent=5 // pred_region
      // Predicated region
      $region33: #{_lambda_.1} parent=31 // pred_check
        %p205 = pneg %p32
      $region34: #{_lambda_.1} parent=31 // pred_check_branch
        %207 = sbr.rel (%p205) target = $region36
      $region35: #{_lambda_.1} parent=31 // pred_region
        %s208 = smul.u32 8, %s12
        %p209 = scmp.lt.s32.totalorder %s208, 15
        %s210 = scalar_select %p209, %s208, 15
        %s211 = smul.addr %s210, 8
        %s212 = scalar_lea.vmem %s0, %s211
        %s213 = smul.u32 8, %s12
      $region36: #{_lambda_.1} parent=31 // pred_fallthru
        _
      // Predicated region
      $region37: #{_lambda_.1} parent=31 // pred_check
        %p214 = pneg %p58
      $region38: #{_lambda_.1} parent=31 // pred_check_branch
        %216 = sbr.rel (%p214) target = $region40
      $region39: #{_lambda_.1} parent=31 // pred_region
        %s217 = smul.u32 8, %s12
        %p218 = scmp.lt.s32.totalorder %s217, 15
        %s219 = scalar_select %p218, %s217, 15
        %s220 = smul.addr %s219, 8
        %s221 = scalar_lea.vmem %s1, %s220
        %s222 = smul.u32 8, %s12
      $region40: #{_lambda_.1} parent=31 // pred_fallthru
        _
    $region32: #{_lambda_.1} parent=5 // pred_fallthru
      _
    %p223 = scmp.le.s32.totalorder 1, %s12
    %p224 = scmp.lt.s32.totalorder %s12, 3
    %p225 = pnand %p223, %p224
    %p226 = pneg %p225
    // Predicated region
    $region41: #{_lambda_.1} parent=5 // pred_check
      _
    $region42: #{_lambda_.1} parent=5 // pred_check_branch
      %228 = sbr.rel (%p225) target = $region44
    $region43: #{_lambda_.1} parent=5 // pred_region
      %s229 = ssub.s32 %s12, 1
      %s230 = smul.u32 8, %s17
      %p231 = scmp.lt.s32.totalorder %s230, 15
      %s232 = scalar_select %p231, %s230, 15
      %s233 = smul.addr %s232, 8
      %s234 = scalar_lea.vmem %s0, %s233
      %p235 = pneg %p38
      %p236 = pneg %p35
      %s237 = smul.u32 8, %s17
      %p238 = scmp.lt.s32.totalorder %s237, 15
      %s239 = scalar_select %p238, %s237, 15
      %s240 = smul.addr %s239, 8
      %s241 = scalar_lea.vmem %s1, %s240
      %p242 = pneg %p64
      %p243 = pneg %p61
      %p244 = pneg %p85
      %p245 = pneg %p82
      %p246 = pneg %p106
      %p247 = pneg %p103
      %p248 = pneg %p127
      %p249 = pneg %p124
      %p250 = pneg %p148
      %p251 = pneg %p145
      %p252 = pneg %p174
      %p253 = pneg %p171
      %p254 = scmp.lt.s32.totalorder %s17, 1
      %s255 = scalar_select %p254, %s17, 1
      %s256 = smul.addr %s255, 8
      %s257 = scalar_lea.vmem %s6, %s256
      %s258 = smul.u32 8, %s17
      %p259 = scmp.lt.s32.totalorder %s258, 15
      %s260 = scalar_select %p259, %s258, 15
      %s261 = smul.addr %s260, 8
      %s262 = scalar_lea.vmem %s0, %s261
      %s263 = smul.u32 8, %s17
      %s264 = smul.u32 8, %s17
      %p265 = scmp.lt.s32.totalorder %s264, 15
      %s266 = scalar_select %p265, %s264, 15
      %s267 = smul.addr %s266, 8
      %s268 = scalar_lea.vmem %s1, %s267
      %s269 = smul.u32 8, %s17
      %p270 = scmp.lt.s32.totalorder %s17, 1
      %s271 = scalar_select %p270, %s17, 1
      %s272 = smul.addr %s271, 8
      %s273 = scalar_lea.vmem %s6, %s272
      %v274 = vld [vmem:[%s262] sm:$0xff]
      %v275 = vld [vmem:[%s262 + $0x8] sm:$0xff]
      %v276 = vld [vmem:[%s262 + $0x10] sm:$0xff]
      %v277 = vld [vmem:[%s262 + $0x18] sm:$0xff]
      %v278 = vld [vmem:[%s262 + $0x20] sm:$0xff]
      %v279 = vld [vmem:[%s262 + $0x28] sm:$0xff]
      %v280 = vld [vmem:[%s262 + $0x30] sm:$0xff]
      %v281 = vld [vmem:[%s262 + $0x38] sm:$0xff]
      %v282 = vld [vmem:[%s2] sm:$0xff]
      %v283 = vld [vmem:[%s2 + $0x8] sm:$0xff]
      %v284 = vld [vmem:[%s3] sm:$0x1]
      %v286 = vperm.slane %v284, 0
      %vm288 = vcmask 130048
      %v290 = vsel %vm288, %v274, 0
      %v293 = vsel %vm288, %v275, 0
      %v296 = vsel %vm288, %v276, 0
      %v299 = vsel %vm288, %v277, 0
      %v302 = vsel %vm288, %v278, 0
      %v305 = vsel %vm288, %v279, 0
      %v308 = vsel %vm288, %v280, 0
      %v311 = vsel %vm288, %v281, 0
      %313 = vmatpush.msra.mxu0 0.0
      %314 = vmatpush.msra.mxu0 0.0
      %315 = vmatpush.msra.mxu0 0.0
      %316 = vmatpush.msra.mxu0 0.0
      %317 = vmatpush.msra.mxu0 0.0
      %318 = vmatpush.msra.mxu0 0.0
      %319 = vmatpush.msra.mxu0 0.0
      %320 = vmatpush.msra.mxu0 0.0
      %321 = vmatpush.msra.mxu0 0.0
      %322 = vmatpush.msra.mxu0 0.0
      %323 = vmatpush.msra.mxu0 0.0
      %324 = vmatpush.msra.mxu0 0.0
      %325 = vmatpush.msra.mxu0 0.0
      %326 = vmatpush.msra.mxu0 0.0
      %327 = vmatpush.msra.mxu0 %v283
      %328 = vmatpush.msra.mxu0 %v282
      %329 = vmatmul.f32.gmra.mxu0 %v290
      %v330 = vpop.f32.mrf.mxu0
      %v331 = vadd.f32 %v286, %v330
      %332 = vmatmul.f32.gmra.mxu0 %v293
      %v333 = vpop.f32.mrf.mxu0
      %v334 = vadd.f32 %v286, %v333
      %335 = vmatmul.f32.gmra.mxu0 %v296
      %v336 = vpop.f32.mrf.mxu0
      %v337 = vadd.f32 %v286, %v336
      %338 = vmatmul.f32.gmra.mxu0 %v299
      %v339 = vpop.f32.mrf.mxu0
      %v340 = vadd.f32 %v286, %v339
      %341 = vmatmul.f32.gmra.mxu0 %v302
      %v342 = vpop.f32.mrf.mxu0
      %v343 = vadd.f32 %v286, %v342
      %344 = vmatmul.f32.gmra.mxu0 %v305
      %v345 = vpop.f32.mrf.mxu0
      %v346 = vadd.f32 %v286, %v345
      %347 = vmatmul.f32.gmra.mxu0 %v308
      %v348 = vpop.f32.mrf.mxu0
      %v349 = vadd.f32 %v286, %v348
      %350 = vmatmul.f32.gmra.mxu0 %v311
      %v351 = vpop.f32.mrf.mxu0
      %v352 = vadd.f32 %v286, %v351
      %353 = vdwg.mxu0
      %v354 = vld [vmem:[%s268] sm:$0xff]
      %v355 = vld [vmem:[%s268 + $0x8] sm:$0xff]
      %v356 = vld [vmem:[%s268 + $0x10] sm:$0xff]
      %v357 = vld [vmem:[%s268 + $0x18] sm:$0xff]
      %v358 = vld [vmem:[%s268 + $0x20] sm:$0xff]
      %v359 = vld [vmem:[%s268 + $0x28] sm:$0xff]
      %v360 = vld [vmem:[%s268 + $0x30] sm:$0xff]
      %v361 = vld [vmem:[%s268 + $0x38] sm:$0xff]
      %v363 = vsel %vm288, %v354, 0
      %v366 = vsel %vm288, %v355, 0
      %v369 = vsel %vm288, %v356, 0
      %v372 = vsel %vm288, %v357, 0
      %v375 = vsel %vm288, %v358, 0
      %v378 = vsel %vm288, %v359, 0
      %v381 = vsel %vm288, %v360, 0
      %v384 = vsel %vm288, %v361, 0
      %386 = vmatpush.msra.mxu0 0.0
      %387 = vmatpush.msra.mxu0 0.0
      %388 = vmatpush.msra.mxu0 0.0
      %389 = vmatpush.msra.mxu0 0.0
      %390 = vmatpush.msra.mxu0 0.0
      %391 = vmatpush.msra.mxu0 0.0
      %392 = vmatpush.msra.mxu0 0.0
      %393 = vmatpush.msra.mxu0 0.0
      %394 = vmatpush.msra.mxu0 0.0
      %395 = vmatpush.msra.mxu0 0.0
      %396 = vmatpush.msra.mxu0 0.0
      %397 = vmatpush.msra.mxu0 0.0
      %398 = vmatpush.msra.mxu0 0.0
      %399 = vmatpush.msra.mxu0 0.0
      %400 = vmatpush.msra.mxu0 %v283
      %401 = vmatpush.msra.mxu0 %v282
      %402 = vmatmul.f32.gmra.mxu0 %v363
      %v403 = vpop.f32.mrf.mxu0
      %v404 = vadd.f32 %v286, %v403
      %405 = vmatmul.f32.gmra.mxu0 %v366
      %v406 = vpop.f32.mrf.mxu0
      %v407 = vadd.f32 %v286, %v406
      %408 = vmatmul.f32.gmra.mxu0 %v369
      %v409 = vpop.f32.mrf.mxu0
      %v410 = vadd.f32 %v286, %v409
      %411 = vmatmul.f32.gmra.mxu0 %v372
      %v412 = vpop.f32.mrf.mxu0
      %v413 = vadd.f32 %v286, %v412
      %414 = vmatmul.f32.gmra.mxu0 %v375
      %v415 = vpop.f32.mrf.mxu0
      %v416 = vadd.f32 %v286, %v415
      %417 = vmatmul.f32.gmra.mxu0 %v378
      %v418 = vpop.f32.mrf.mxu0
      %v419 = vadd.f32 %v286, %v418
      %420 = vmatmul.f32.gmra.mxu0 %v381
      %v421 = vpop.f32.mrf.mxu0
      %v422 = vadd.f32 %v286, %v421
      %423 = vmatmul.f32.gmra.mxu0 %v384
      %v424 = vpop.f32.mrf.mxu0
      %v425 = vadd.f32 %v286, %v424
      %426 = vdwg.mxu0
      %v427 = vsub.f32 %v331, %v404
      %v428 = vsub.f32 %v334, %v407
      %v429 = vsub.f32 %v337, %v410
      %v430 = vsub.f32 %v340, %v413
      %v431 = vsub.f32 %v343, %v416
      %v432 = vsub.f32 %v346, %v419
      %v433 = vsub.f32 %v349, %v422
      %v434 = vsub.f32 %v352, %v425
      %v435 = vand.u32 2147483647, %v427
      %v436 = vand.u32 2147483647, %v428
      %v437 = vand.u32 2147483647, %v429
      %v438 = vand.u32 2147483647, %v430
      %v439 = vand.u32 2147483647, %v431
      %v440 = vand.u32 2147483647, %v432
      %v441 = vand.u32 2147483647, %v433
      %v442 = vand.u32 2147483647, %v434
      %v443 = vld [vmem:[%s4] sm:$0xff]
      %v444 = vld [vmem:[%s4 + $0x8] sm:$0xff]
      %v445 = vld [vmem:[%s4 + $0x10] sm:$0xff]
      %v446 = vld [vmem:[%s4 + $0x18] sm:$0xff]
      %v447 = vld [vmem:[%s4 + $0x20] sm:$0xff]
      %v448 = vld [vmem:[%s4 + $0x28] sm:$0xff]
      %v449 = vld [vmem:[%s4 + $0x30] sm:$0xff]
      %v450 = vld [vmem:[%s4 + $0x38] sm:$0xff]
      %v451 = vld [vmem:[%s4 + $0x40] sm:$0xff]
      %v452 = vld [vmem:[%s4 + $0x48] sm:$0xff]
      %v453 = vld [vmem:[%s4 + $0x50] sm:$0xff]
      %v454 = vld [vmem:[%s4 + $0x58] sm:$0xff]
      %v455 = vld [vmem:[%s4 + $0x60] sm:$0xff]
      %v456 = vld [vmem:[%s4 + $0x68] sm:$0xff]
      %v457 = vld [vmem:[%s4 + $0x70] sm:$0xff]
      %v458 = vld [vmem:[%s4 + $0x78] sm:$0xff]
      %v459 = vld [vmem:[%s5] sm:$0x1]
      %v461 = vperm.slane %v459, 0
      %463 = vmatpush.msra.mxu0 %v458
      %464 = vmatpush.msra.mxu0 %v457
      %465 = vmatpush.msra.mxu0 %v456
      %466 = vmatpush.msra.mxu0 %v455
      %467 = vmatpush.msra.mxu0 %v454
      %468 = vmatpush.msra.mxu0 %v453
      %469 = vmatpush.msra.mxu0 %v452
      %470 = vmatpush.msra.mxu0 %v451
      %471 = vmatpush.msra.mxu0 %v450
      %472 = vmatpush.msra.mxu0 %v449
      %473 = vmatpush.msra.mxu0 %v448
      %474 = vmatpush.msra.mxu0 %v447
      %475 = vmatpush.msra.mxu0 %v446
      %476 = vmatpush.msra.mxu0 %v445
      %477 = vmatpush.msra.mxu0 %v444
      %478 = vmatpush.msra.mxu0 %v443
      %479 = vmatmul.f32.gmra.mxu0 %v331
      %v480 = vpop.f32.mrf.mxu0
      %v481 = vadd.f32 %v461, %v480
      %482 = vmatmul.f32.gmra.mxu0 %v334
      %v483 = vpop.f32.mrf.mxu0
      %v484 = vadd.f32 %v461, %v483
      %485 = vmatmul.f32.gmra.mxu0 %v337
      %v486 = vpop.f32.mrf.mxu0
      %v487 = vadd.f32 %v461, %v486
      %488 = vmatmul.f32.gmra.mxu0 %v340
      %v489 = vpop.f32.mrf.mxu0
      %v490 = vadd.f32 %v461, %v489
      %491 = vmatmul.f32.gmra.mxu0 %v343
      %v492 = vpop.f32.mrf.mxu0
      %v493 = vadd.f32 %v461, %v492
      %494 = vmatmul.f32.gmra.mxu0 %v346
      %v495 = vpop.f32.mrf.mxu0
      %v496 = vadd.f32 %v461, %v495
      %497 = vmatmul.f32.gmra.mxu0 %v349
      %v498 = vpop.f32.mrf.mxu0
      %v499 = vadd.f32 %v461, %v498
      %500 = vmatmul.f32.gmra.mxu0 %v352
      %v501 = vpop.f32.mrf.mxu0
      %v502 = vadd.f32 %v461, %v501
      %503 = vdwg.mxu0
      %v504 = vmul.f32 %v481, %v481
      %v505 = vmul.f32 %v484, %v484
      %v506 = vmul.f32 %v487, %v487
      %v507 = vmul.f32 %v490, %v490
      %v508 = vmul.f32 %v493, %v493
      %v509 = vmul.f32 %v496, %v496
      %v510 = vmul.f32 %v499, %v499
      %v511 = vmul.f32 %v502, %v502
      %v512 = vmul.f32 %v481, %v504
      %v513 = vmul.f32 %v484, %v505
      %v514 = vmul.f32 %v487, %v506
      %v515 = vmul.f32 %v490, %v507
      %v516 = vmul.f32 %v493, %v508
      %v517 = vmul.f32 %v496, %v509
      %v518 = vmul.f32 %v499, %v510
      %v519 = vmul.f32 %v502, %v511
      %v520 = vmul.f32 %v512, 0.044715
      %v521 = vmul.f32 %v513, 0.044715
      %v522 = vmul.f32 %v514, 0.044715
      %v523 = vmul.f32 %v515, 0.044715
      %v524 = vmul.f32 %v516, 0.044715
      %v525 = vmul.f32 %v517, 0.044715
      %v526 = vmul.f32 %v518, 0.044715
      %v527 = vmul.f32 %v519, 0.044715
      %v528 = vadd.f32 %v481, %v520
      %v529 = vadd.f32 %v484, %v521
      %v530 = vadd.f32 %v487, %v522
      %v531 = vadd.f32 %v490, %v523
      %v532 = vadd.f32 %v493, %v524
      %v533 = vadd.f32 %v496, %v525
      %v534 = vadd.f32 %v499, %v526
      %v535 = vadd.f32 %v502, %v527
      %v536 = vmul.f32 %v528, 0.7978846
      %v537 = vmul.f32 %v529, 0.7978846
      %v538 = vmul.f32 %v530, 0.7978846
      %v539 = vmul.f32 %v531, 0.7978846
      %v540 = vmul.f32 %v532, 0.7978846
      %v541 = vmul.f32 %v533, 0.7978846
      %v542 = vmul.f32 %v534, 0.7978846
      %v543 = vmul.f32 %v535, 0.7978846
      %v544 = vtanh.pop %v536
      %v545 = vtanh.pop %v537
      %v546 = vtanh.pop %v538
      %v547 = vtanh.pop %v539
      %v548 = vtanh.pop %v540
      %v549 = vtanh.pop %v541
      %v550 = vtanh.pop %v542
      %v551 = vtanh.pop %v543
      %v552 = vadd.f32 %v544, 1.0
      %v553 = vadd.f32 %v545, 1.0
      %v554 = vadd.f32 %v546, 1.0
      %v555 = vadd.f32 %v547, 1.0
      %v556 = vadd.f32 %v548, 1.0
      %v557 = vadd.f32 %v549, 1.0
      %v558 = vadd.f32 %v550, 1.0
      %v559 = vadd.f32 %v551, 1.0
      %v560 = vmul.f32 %v552, 0.5
      %v561 = vmul.f32 %v553, 0.5
      %v562 = vmul.f32 %v554, 0.5
      %v563 = vmul.f32 %v555, 0.5
      %v564 = vmul.f32 %v556, 0.5
      %v565 = vmul.f32 %v557, 0.5
      %v566 = vmul.f32 %v558, 0.5
      %v567 = vmul.f32 %v559, 0.5
      %v568 = vmul.f32 %v481, %v560
      %v569 = vmul.f32 %v484, %v561
      %v570 = vmul.f32 %v487, %v562
      %v571 = vmul.f32 %v490, %v563
      %v572 = vmul.f32 %v493, %v564
      %v573 = vmul.f32 %v496, %v565
      %v574 = vmul.f32 %v499, %v566
      %v575 = vmul.f32 %v502, %v567
      %576 = vmatpush.msra.mxu0 %v458
      %577 = vmatpush.msra.mxu0 %v457
      %578 = vmatpush.msra.mxu0 %v456
      %579 = vmatpush.msra.mxu0 %v455
      %580 = vmatpush.msra.mxu0 %v454
      %581 = vmatpush.msra.mxu0 %v453
      %582 = vmatpush.msra.mxu0 %v452
      %583 = vmatpush.msra.mxu0 %v451
      %584 = vmatpush.msra.mxu0 %v450
      %585 = vmatpush.msra.mxu0 %v449
      %586 = vmatpush.msra.mxu0 %v448
      %587 = vmatpush.msra.mxu0 %v447
      %588 = vmatpush.msra.mxu0 %v446
      %589 = vmatpush.msra.mxu0 %v445
      %590 = vmatpush.msra.mxu0 %v444
      %591 = vmatpush.msra.mxu0 %v443
      %592 = vmatmul.f32.gmra.mxu0 %v404
      %v593 = vpop.f32.mrf.mxu0
      %v594 = vadd.f32 %v461, %v593
      %595 = vmatmul.f32.gmra.mxu0 %v407
      %v596 = vpop.f32.mrf.mxu0
      %v597 = vadd.f32 %v461, %v596
      %598 = vmatmul.f32.gmra.mxu0 %v410
      %v599 = vpop.f32.mrf.mxu0
      %v600 = vadd.f32 %v461, %v599
      %601 = vmatmul.f32.gmra.mxu0 %v413
      %v602 = vpop.f32.mrf.mxu0
      %v603 = vadd.f32 %v461, %v602
      %604 = vmatmul.f32.gmra.mxu0 %v416
      %v605 = vpop.f32.mrf.mxu0
      %v606 = vadd.f32 %v461, %v605
      %607 = vmatmul.f32.gmra.mxu0 %v419
      %v608 = vpop.f32.mrf.mxu0
      %v609 = vadd.f32 %v461, %v608
      %610 = vmatmul.f32.gmra.mxu0 %v422
      %v611 = vpop.f32.mrf.mxu0
      %v612 = vadd.f32 %v461, %v611
      %613 = vmatmul.f32.gmra.mxu0 %v425
      %v614 = vpop.f32.mrf.mxu0
      %v615 = vadd.f32 %v461, %v614
      %616 = vdwg.mxu0
      %v617 = vmul.f32 %v594, %v594
      %v618 = vmul.f32 %v597, %v597
      %v619 = vmul.f32 %v600, %v600
      %v620 = vmul.f32 %v603, %v603
      %v621 = vmul.f32 %v606, %v606
      %v622 = vmul.f32 %v609, %v609
      %v623 = vmul.f32 %v612, %v612
      %v624 = vmul.f32 %v615, %v615
      %v625 = vmul.f32 %v594, %v617
      %v626 = vmul.f32 %v597, %v618
      %v627 = vmul.f32 %v600, %v619
      %v628 = vmul.f32 %v603, %v620
      %v629 = vmul.f32 %v606, %v621
      %v630 = vmul.f32 %v609, %v622
      %v631 = vmul.f32 %v612, %v623
      %v632 = vmul.f32 %v615, %v624
      %v633 = vmul.f32 %v625, 0.044715
      %v634 = vmul.f32 %v626, 0.044715
      %v635 = vmul.f32 %v627, 0.044715
      %v636 = vmul.f32 %v628, 0.044715
      %v637 = vmul.f32 %v629, 0.044715
      %v638 = vmul.f32 %v630, 0.044715
      %v639 = vmul.f32 %v631, 0.044715
      %v640 = vmul.f32 %v632, 0.044715
      %v641 = vadd.f32 %v594, %v633
      %v642 = vadd.f32 %v597, %v634
      %v643 = vadd.f32 %v600, %v635
      %v644 = vadd.f32 %v603, %v636
      %v645 = vadd.f32 %v606, %v637
      %v646 = vadd.f32 %v609, %v638
      %v647 = vadd.f32 %v612, %v639
      %v648 = vadd.f32 %v615, %v640
      %v649 = vmul.f32 %v641, 0.7978846
      %v650 = vmul.f32 %v642, 0.7978846
      %v651 = vmul.f32 %v643, 0.7978846
      %v652 = vmul.f32 %v644, 0.7978846
      %v653 = vmul.f32 %v645, 0.7978846
      %v654 = vmul.f32 %v646, 0.7978846
      %v655 = vmul.f32 %v647, 0.7978846
      %v656 = vmul.f32 %v648, 0.7978846
      %v657 = vtanh.pop %v649
      %v658 = vtanh.pop %v650
      %v659 = vtanh.pop %v651
      %v660 = vtanh.pop %v652
      %v661 = vtanh.pop %v653
      %v662 = vtanh.pop %v654
      %v663 = vtanh.pop %v655
      %v664 = vtanh.pop %v656
      %v665 = vadd.f32 %v657, 1.0
      %v666 = vadd.f32 %v658, 1.0
      %v667 = vadd.f32 %v659, 1.0
      %v668 = vadd.f32 %v660, 1.0
      %v669 = vadd.f32 %v661, 1.0
      %v670 = vadd.f32 %v662, 1.0
      %v671 = vadd.f32 %v663, 1.0
      %v672 = vadd.f32 %v664, 1.0
      %v673 = vmul.f32 %v665, 0.5
      %v674 = vmul.f32 %v666, 0.5
      %v675 = vmul.f32 %v667, 0.5
      %v676 = vmul.f32 %v668, 0.5
      %v677 = vmul.f32 %v669, 0.5
      %v678 = vmul.f32 %v670, 0.5
      %v679 = vmul.f32 %v671, 0.5
      %v680 = vmul.f32 %v672, 0.5
      %v681 = vmul.f32 %v594, %v673
      %v682 = vmul.f32 %v597, %v674
      %v683 = vmul.f32 %v600, %v675
      %v684 = vmul.f32 %v603, %v676
      %v685 = vmul.f32 %v606, %v677
      %v686 = vmul.f32 %v609, %v678
      %v687 = vmul.f32 %v612, %v679
      %v688 = vmul.f32 %v615, %v680
      %v689 = vsub.f32 %v568, %v681
      %v690 = vsub.f32 %v569, %v682
      %v691 = vsub.f32 %v570, %v683
      %v692 = vsub.f32 %v571, %v684
      %v693 = vsub.f32 %v572, %v685
      %v694 = vsub.f32 %v573, %v686
      %v695 = vsub.f32 %v574, %v687
      %v696 = vsub.f32 %v575, %v688
      %v697 = vand.u32 2147483647, %v689
      %v698 = vand.u32 2147483647, %v690
      %v699 = vand.u32 2147483647, %v691
      %v700 = vand.u32 2147483647, %v692
      %v701 = vand.u32 2147483647, %v693
      %v702 = vand.u32 2147483647, %v694
      %v703 = vand.u32 2147483647, %v695
      %v704 = vand.u32 2147483647, %v696
      %v705 = vadd.f32 %v435, %v697
      %v706 = vadd.f32 %v436, %v698
      %v707 = vadd.f32 %v437, %v699
      %v708 = vadd.f32 %v438, %v700
      %v709 = vadd.f32 %v439, %v701
      %v710 = vadd.f32 %v440, %v702
      %v711 = vadd.f32 %v441, %v703
      %v712 = vadd.f32 %v442, %v704
      %s713 = scalar_lea.vmem %s4, 128
      %v714 = vld [vmem:[%s713] sm:$0xff]
      %v715 = vld [vmem:[%s713 + $0x8] sm:$0xff]
      %v716 = vld [vmem:[%s713 + $0x10] sm:$0xff]
      %v717 = vld [vmem:[%s713 + $0x18] sm:$0xff]
      %v718 = vld [vmem:[%s713 + $0x20] sm:$0xff]
      %v719 = vld [vmem:[%s713 + $0x28] sm:$0xff]
      %v720 = vld [vmem:[%s713 + $0x30] sm:$0xff]
      %v721 = vld [vmem:[%s713 + $0x38] sm:$0xff]
      %v722 = vld [vmem:[%s713 + $0x40] sm:$0xff]
      %v723 = vld [vmem:[%s713 + $0x48] sm:$0xff]
      %v724 = vld [vmem:[%s713 + $0x50] sm:$0xff]
      %v725 = vld [vmem:[%s713 + $0x58] sm:$0xff]
      %v726 = vld [vmem:[%s713 + $0x60] sm:$0xff]
      %v727 = vld [vmem:[%s713 + $0x68] sm:$0xff]
      %v728 = vld [vmem:[%s713 + $0x70] sm:$0xff]
      %v729 = vld [vmem:[%s713 + $0x78] sm:$0xff]
      %s730 = scalar_lea.vmem %s5, 1
      %v731 = vld [vmem:[%s730] sm:$0x1]
      %v733 = vperm.slane %v731, 0
      %735 = vmatpush.msra.mxu0 %v729
      %736 = vmatpush.msra.mxu0 %v728
      %737 = vmatpush.msra.mxu0 %v727
      %738 = vmatpush.msra.mxu0 %v726
      %739 = vmatpush.msra.mxu0 %v725
      %740 = vmatpush.msra.mxu0 %v724
      %741 = vmatpush.msra.mxu0 %v723
      %742 = vmatpush.msra.mxu0 %v722
      %743 = vmatpush.msra.mxu0 %v721
      %744 = vmatpush.msra.mxu0 %v720
      %745 = vmatpush.msra.mxu0 %v719
      %746 = vmatpush.msra.mxu0 %v718
      %747 = vmatpush.msra.mxu0 %v717
      %748 = vmatpush.msra.mxu0 %v716
      %749 = vmatpush.msra.mxu0 %v715
      %750 = vmatpush.msra.mxu0 %v714
      %751 = vmatmul.f32.gmra.mxu0 %v568
      %v752 = vpop.f32.mrf.mxu0
      %v753 = vadd.f32 %v733, %v752
      %754 = vmatmul.f32.gmra.mxu0 %v569
      %v755 = vpop.f32.mrf.mxu0
      %v756 = vadd.f32 %v733, %v755
      %757 = vmatmul.f32.gmra.mxu0 %v570
      %v758 = vpop.f32.mrf.mxu0
      %v759 = vadd.f32 %v733, %v758
      %760 = vmatmul.f32.gmra.mxu0 %v571
      %v761 = vpop.f32.mrf.mxu0
      %v762 = vadd.f32 %v733, %v761
      %763 = vmatmul.f32.gmra.mxu0 %v572
      %v764 = vpop.f32.mrf.mxu0
      %v765 = vadd.f32 %v733, %v764
      %766 = vmatmul.f32.gmra.mxu0 %v573
      %v767 = vpop.f32.mrf.mxu0
      %v768 = vadd.f32 %v733, %v767
      %769 = vmatmul.f32.gmra.mxu0 %v574
      %v770 = vpop.f32.mrf.mxu0
      %v771 = vadd.f32 %v733, %v770
      %772 = vmatmul.f32.gmra.mxu0 %v575
      %v773 = vpop.f32.mrf.mxu0
      %v774 = vadd.f32 %v733, %v773
      %775 = vdwg.mxu0
      %v776 = vmul.f32 %v753, %v753
      %v777 = vmul.f32 %v756, %v756
      %v778 = vmul.f32 %v759, %v759
      %v779 = vmul.f32 %v762, %v762
      %v780 = vmul.f32 %v765, %v765
      %v781 = vmul.f32 %v768, %v768
      %v782 = vmul.f32 %v771, %v771
      %v783 = vmul.f32 %v774, %v774
      %v784 = vmul.f32 %v753, %v776
      %v785 = vmul.f32 %v756, %v777
      %v786 = vmul.f32 %v759, %v778
      %v787 = vmul.f32 %v762, %v779
      %v788 = vmul.f32 %v765, %v780
      %v789 = vmul.f32 %v768, %v781
      %v790 = vmul.f32 %v771, %v782
      %v791 = vmul.f32 %v774, %v783
      %v792 = vmul.f32 %v784, 0.044715
      %v793 = vmul.f32 %v785, 0.044715
      %v794 = vmul.f32 %v786, 0.044715
      %v795 = vmul.f32 %v787, 0.044715
      %v796 = vmul.f32 %v788, 0.044715
      %v797 = vmul.f32 %v789, 0.044715
      %v798 = vmul.f32 %v790, 0.044715
      %v799 = vmul.f32 %v791, 0.044715
      %v800 = vadd.f32 %v753, %v792
      %v801 = vadd.f32 %v756, %v793
      %v802 = vadd.f32 %v759, %v794
      %v803 = vadd.f32 %v762, %v795
      %v804 = vadd.f32 %v765, %v796
      %v805 = vadd.f32 %v768, %v797
      %v806 = vadd.f32 %v771, %v798
      %v807 = vadd.f32 %v774, %v799
      %v808 = vmul.f32 %v800, 0.7978846
      %v809 = vmul.f32 %v801, 0.7978846
      %v810 = vmul.f32 %v802, 0.7978846
      %v811 = vmul.f32 %v803, 0.7978846
      %v812 = vmul.f32 %v804, 0.7978846
      %v813 = vmul.f32 %v805, 0.7978846
      %v814 = vmul.f32 %v806, 0.7978846
      %v815 = vmul.f32 %v807, 0.7978846
      %v816 = vtanh.pop %v808
      %v817 = vtanh.pop %v809
      %v818 = vtanh.pop %v810
      %v819 = vtanh.pop %v811
      %v820 = vtanh.pop %v812
      %v821 = vtanh.pop %v813
      %v822 = vtanh.pop %v814
      %v823 = vtanh.pop %v815
      %v824 = vadd.f32 %v816, 1.0
      %v825 = vadd.f32 %v817, 1.0
      %v826 = vadd.f32 %v818, 1.0
      %v827 = vadd.f32 %v819, 1.0
      %v828 = vadd.f32 %v820, 1.0
      %v829 = vadd.f32 %v821, 1.0
      %v830 = vadd.f32 %v822, 1.0
      %v831 = vadd.f32 %v823, 1.0
      %v832 = vmul.f32 %v824, 0.5
      %v833 = vmul.f32 %v825, 0.5
      %v834 = vmul.f32 %v826, 0.5
      %v835 = vmul.f32 %v827, 0.5
      %v836 = vmul.f32 %v828, 0.5
      %v837 = vmul.f32 %v829, 0.5
      %v838 = vmul.f32 %v830, 0.5
      %v839 = vmul.f32 %v831, 0.5
      %v840 = vmul.f32 %v753, %v832
      %v841 = vmul.f32 %v756, %v833
      %v842 = vmul.f32 %v759, %v834
      %v843 = vmul.f32 %v762, %v835
      %v844 = vmul.f32 %v765, %v836
      %v845 = vmul.f32 %v768, %v837
      %v846 = vmul.f32 %v771, %v838
      %v847 = vmul.f32 %v774, %v839
      %848 = vmatpush.msra.mxu0 %v729
      %849 = vmatpush.msra.mxu0 %v728
      %850 = vmatpush.msra.mxu0 %v727
      %851 = vmatpush.msra.mxu0 %v726
      %852 = vmatpush.msra.mxu0 %v725
      %853 = vmatpush.msra.mxu0 %v724
      %854 = vmatpush.msra.mxu0 %v723
      %855 = vmatpush.msra.mxu0 %v722
      %856 = vmatpush.msra.mxu0 %v721
      %857 = vmatpush.msra.mxu0 %v720
      %858 = vmatpush.msra.mxu0 %v719
      %859 = vmatpush.msra.mxu0 %v718
      %860 = vmatpush.msra.mxu0 %v717
      %861 = vmatpush.msra.mxu0 %v716
      %862 = vmatpush.msra.mxu0 %v715
      %863 = vmatpush.msra.mxu0 %v714
      %864 = vmatmul.f32.gmra.mxu0 %v681
      %v865 = vpop.f32.mrf.mxu0
      %v866 = vadd.f32 %v733, %v865
      %867 = vmatmul.f32.gmra.mxu0 %v682
      %v868 = vpop.f32.mrf.mxu0
      %v869 = vadd.f32 %v733, %v868
      %870 = vmatmul.f32.gmra.mxu0 %v683
      %v871 = vpop.f32.mrf.mxu0
      %v872 = vadd.f32 %v733, %v871
      %873 = vmatmul.f32.gmra.mxu0 %v684
      %v874 = vpop.f32.mrf.mxu0
      %v875 = vadd.f32 %v733, %v874
      %876 = vmatmul.f32.gmra.mxu0 %v685
      %v877 = vpop.f32.mrf.mxu0
      %v878 = vadd.f32 %v733, %v877
      %879 = vmatmul.f32.gmra.mxu0 %v686
      %v880 = vpop.f32.mrf.mxu0
      %v881 = vadd.f32 %v733, %v880
      %882 = vmatmul.f32.gmra.mxu0 %v687
      %v883 = vpop.f32.mrf.mxu0
      %v884 = vadd.f32 %v733, %v883
      %885 = vmatmul.f32.gmra.mxu0 %v688
      %v886 = vpop.f32.mrf.mxu0
      %v887 = vadd.f32 %v733, %v886
      %888 = vdwg.mxu0
      %v889 = vmul.f32 %v866, %v866
      %v890 = vmul.f32 %v869, %v869
      %v891 = vmul.f32 %v872, %v872
      %v892 = vmul.f32 %v875, %v875
      %v893 = vmul.f32 %v878, %v878
      %v894 = vmul.f32 %v881, %v881
      %v895 = vmul.f32 %v884, %v884
      %v896 = vmul.f32 %v887, %v887
      %v897 = vmul.f32 %v866, %v889
      %v898 = vmul.f32 %v869, %v890
      %v899 = vmul.f32 %v872, %v891
      %v900 = vmul.f32 %v875, %v892
      %v901 = vmul.f32 %v878, %v893
      %v902 = vmul.f32 %v881, %v894
      %v903 = vmul.f32 %v884, %v895
      %v904 = vmul.f32 %v887, %v896
      %v905 = vmul.f32 %v897, 0.044715
      %v906 = vmul.f32 %v898, 0.044715
      %v907 = vmul.f32 %v899, 0.044715
      %v908 = vmul.f32 %v900, 0.044715
      %v909 = vmul.f32 %v901, 0.044715
      %v910 = vmul.f32 %v902, 0.044715
      %v911 = vmul.f32 %v903, 0.044715
      %v912 = vmul.f32 %v904, 0.044715
      %v913 = vadd.f32 %v866, %v905
      %v914 = vadd.f32 %v869, %v906
      %v915 = vadd.f32 %v872, %v907
      %v916 = vadd.f32 %v875, %v908
      %v917 = vadd.f32 %v878, %v909
      %v918 = vadd.f32 %v881, %v910
      %v919 = vadd.f32 %v884, %v911
      %v920 = vadd.f32 %v887, %v912
      %v921 = vmul.f32 %v913, 0.7978846
      %v922 = vmul.f32 %v914, 0.7978846
      %v923 = vmul.f32 %v915, 0.7978846
      %v924 = vmul.f32 %v916, 0.7978846
      %v925 = vmul.f32 %v917, 0.7978846
      %v926 = vmul.f32 %v918, 0.7978846
      %v927 = vmul.f32 %v919, 0.7978846
      %v928 = vmul.f32 %v920, 0.7978846
      %v929 = vtanh.pop %v921
      %v930 = vtanh.pop %v922
      %v931 = vtanh.pop %v923
      %v932 = vtanh.pop %v924
      %v933 = vtanh.pop %v925
      %v934 = vtanh.pop %v926
      %v935 = vtanh.pop %v927
      %v936 = vtanh.pop %v928
      %v937 = vadd.f32 %v929, 1.0
      %v938 = vadd.f32 %v930, 1.0
      %v939 = vadd.f32 %v931, 1.0
      %v940 = vadd.f32 %v932, 1.0
      %v941 = vadd.f32 %v933, 1.0
      %v942 = vadd.f32 %v934, 1.0
      %v943 = vadd.f32 %v935, 1.0
      %v944 = vadd.f32 %v936, 1.0
      %v945 = vmul.f32 %v937, 0.5
      %v946 = vmul.f32 %v938, 0.5
      %v947 = vmul.f32 %v939, 0.5
      %v948 = vmul.f32 %v940, 0.5
      %v949 = vmul.f32 %v941, 0.5
      %v950 = vmul.f32 %v942, 0.5
      %v951 = vmul.f32 %v943, 0.5
      %v952 = vmul.f32 %v944, 0.5
      %v953 = vmul.f32 %v866, %v945
      %v954 = vmul.f32 %v869, %v946
      %v955 = vmul.f32 %v872, %v947
      %v956 = vmul.f32 %v875, %v948
      %v957 = vmul.f32 %v878, %v949
      %v958 = vmul.f32 %v881, %v950
      %v959 = vmul.f32 %v884, %v951
      %v960 = vmul.f32 %v887, %v952
      %v961 = vsub.f32 %v840, %v953
      %v962 = vsub.f32 %v841, %v954
      %v963 = vsub.f32 %v842, %v955
      %v964 = vsub.f32 %v843, %v956
      %v965 = vsub.f32 %v844, %v957
      %v966 = vsub.f32 %v845, %v958
      %v967 = vsub.f32 %v846, %v959
      %v968 = vsub.f32 %v847, %v960
      %v969 = vand.u32 2147483647, %v961
      %v970 = vand.u32 2147483647, %v962
      %v971 = vand.u32 2147483647, %v963
      %v972 = vand.u32 2147483647, %v964
      %v973 = vand.u32 2147483647, %v965
      %v974 = vand.u32 2147483647, %v966
      %v975 = vand.u32 2147483647, %v967
      %v976 = vand.u32 2147483647, %v968
      %v977 = vadd.f32 %v705, %v969
      %v978 = vadd.f32 %v706, %v970
      %v979 = vadd.f32 %v707, %v971
      %v980 = vadd.f32 %v708, %v972
      %v981 = vadd.f32 %v709, %v973
      %v982 = vadd.f32 %v710, %v974
      %v983 = vadd.f32 %v711, %v975
      %v984 = vadd.f32 %v712, %v976
      %s985 = scalar_lea.vmem %s4, 256
      %v986 = vld [vmem:[%s985] sm:$0xff]
      %v987 = vld [vmem:[%s985 + $0x8] sm:$0xff]
      %v988 = vld [vmem:[%s985 + $0x10] sm:$0xff]
      %v989 = vld [vmem:[%s985 + $0x18] sm:$0xff]
      %v990 = vld [vmem:[%s985 + $0x20] sm:$0xff]
      %v991 = vld [vmem:[%s985 + $0x28] sm:$0xff]
      %v992 = vld [vmem:[%s985 + $0x30] sm:$0xff]
      %v993 = vld [vmem:[%s985 + $0x38] sm:$0xff]
      %v994 = vld [vmem:[%s985 + $0x40] sm:$0xff]
      %v995 = vld [vmem:[%s985 + $0x48] sm:$0xff]
      %v996 = vld [vmem:[%s985 + $0x50] sm:$0xff]
      %v997 = vld [vmem:[%s985 + $0x58] sm:$0xff]
      %v998 = vld [vmem:[%s985 + $0x60] sm:$0xff]
      %v999 = vld [vmem:[%s985 + $0x68] sm:$0xff]
      %v1000 = vld [vmem:[%s985 + $0x70] sm:$0xff]
      %v1001 = vld [vmem:[%s985 + $0x78] sm:$0xff]
      %s1002 = scalar_lea.vmem %s5, 2
      %v1003 = vld [vmem:[%s1002] sm:$0x1]
      %v1005 = vperm.slane %v1003, 0
      %1007 = vmatpush.msra.mxu0 %v1001
      %1008 = vmatpush.msra.mxu0 %v1000
      %1009 = vmatpush.msra.mxu0 %v999
      %1010 = vmatpush.msra.mxu0 %v998
      %1011 = vmatpush.msra.mxu0 %v997
      %1012 = vmatpush.msra.mxu0 %v996
      %1013 = vmatpush.msra.mxu0 %v995
      %1014 = vmatpush.msra.mxu0 %v994
      %1015 = vmatpush.msra.mxu0 %v993
      %1016 = vmatpush.msra.mxu0 %v992
      %1017 = vmatpush.msra.mxu0 %v991
      %1018 = vmatpush.msra.mxu0 %v990
      %1019 = vmatpush.msra.mxu0 %v989
      %1020 = vmatpush.msra.mxu0 %v988
      %1021 = vmatpush.msra.mxu0 %v987
      %1022 = vmatpush.msra.mxu0 %v986
      %1023 = vmatmul.f32.gmra.mxu0 %v840
      %v1024 = vpop.f32.mrf.mxu0
      %v1025 = vadd.f32 %v1005, %v1024
      %1026 = vmatmul.f32.gmra.mxu0 %v841
      %v1027 = vpop.f32.mrf.mxu0
      %v1028 = vadd.f32 %v1005, %v1027
      %1029 = vmatmul.f32.gmra.mxu0 %v842
      %v1030 = vpop.f32.mrf.mxu0
      %v1031 = vadd.f32 %v1005, %v1030
      %1032 = vmatmul.f32.gmra.mxu0 %v843
      %v1033 = vpop.f32.mrf.mxu0
      %v1034 = vadd.f32 %v1005, %v1033
      %1035 = vmatmul.f32.gmra.mxu0 %v844
      %v1036 = vpop.f32.mrf.mxu0
      %v1037 = vadd.f32 %v1005, %v1036
      %1038 = vmatmul.f32.gmra.mxu0 %v845
      %v1039 = vpop.f32.mrf.mxu0
      %v1040 = vadd.f32 %v1005, %v1039
      %1041 = vmatmul.f32.gmra.mxu0 %v846
      %v1042 = vpop.f32.mrf.mxu0
      %v1043 = vadd.f32 %v1005, %v1042
      %1044 = vmatmul.f32.gmra.mxu0 %v847
      %v1045 = vpop.f32.mrf.mxu0
      %v1046 = vadd.f32 %v1005, %v1045
      %1047 = vdwg.mxu0
      %v1048 = vmul.f32 %v1025, %v1025
      %v1049 = vmul.f32 %v1028, %v1028
      %v1050 = vmul.f32 %v1031, %v1031
      %v1051 = vmul.f32 %v1034, %v1034
      %v1052 = vmul.f32 %v1037, %v1037
      %v1053 = vmul.f32 %v1040, %v1040
      %v1054 = vmul.f32 %v1043, %v1043
      %v1055 = vmul.f32 %v1046, %v1046
      %v1056 = vmul.f32 %v1025, %v1048
      %v1057 = vmul.f32 %v1028, %v1049
      %v1058 = vmul.f32 %v1031, %v1050
      %v1059 = vmul.f32 %v1034, %v1051
      %v1060 = vmul.f32 %v1037, %v1052
      %v1061 = vmul.f32 %v1040, %v1053
      %v1062 = vmul.f32 %v1043, %v1054
      %v1063 = vmul.f32 %v1046, %v1055
      %v1064 = vmul.f32 %v1056, 0.044715
      %v1065 = vmul.f32 %v1057, 0.044715
      %v1066 = vmul.f32 %v1058, 0.044715
      %v1067 = vmul.f32 %v1059, 0.044715
      %v1068 = vmul.f32 %v1060, 0.044715
      %v1069 = vmul.f32 %v1061, 0.044715
      %v1070 = vmul.f32 %v1062, 0.044715
      %v1071 = vmul.f32 %v1063, 0.044715
      %v1072 = vadd.f32 %v1025, %v1064
      %v1073 = vadd.f32 %v1028, %v1065
      %v1074 = vadd.f32 %v1031, %v1066
      %v1075 = vadd.f32 %v1034, %v1067
      %v1076 = vadd.f32 %v1037, %v1068
      %v1077 = vadd.f32 %v1040, %v1069
      %v1078 = vadd.f32 %v1043, %v1070
      %v1079 = vadd.f32 %v1046, %v1071
      %v1080 = vmul.f32 %v1072, 0.7978846
      %v1081 = vmul.f32 %v1073, 0.7978846
      %v1082 = vmul.f32 %v1074, 0.7978846
      %v1083 = vmul.f32 %v1075, 0.7978846
      %v1084 = vmul.f32 %v1076, 0.7978846
      %v1085 = vmul.f32 %v1077, 0.7978846
      %v1086 = vmul.f32 %v1078, 0.7978846
      %v1087 = vmul.f32 %v1079, 0.7978846
      %v1088 = vtanh.pop %v1080
      %v1089 = vtanh.pop %v1081
      %v1090 = vtanh.pop %v1082
      %v1091 = vtanh.pop %v1083
      %v1092 = vtanh.pop %v1084
      %v1093 = vtanh.pop %v1085
      %v1094 = vtanh.pop %v1086
      %v1095 = vtanh.pop %v1087
      %v1096 = vadd.f32 %v1088, 1.0
      %v1097 = vadd.f32 %v1089, 1.0
      %v1098 = vadd.f32 %v1090, 1.0
      %v1099 = vadd.f32 %v1091, 1.0
      %v1100 = vadd.f32 %v1092, 1.0
      %v1101 = vadd.f32 %v1093, 1.0
      %v1102 = vadd.f32 %v1094, 1.0
      %v1103 = vadd.f32 %v1095, 1.0
      %v1104 = vmul.f32 %v1096, 0.5
      %v1105 = vmul.f32 %v1097, 0.5
      %v1106 = vmul.f32 %v1098, 0.5
      %v1107 = vmul.f32 %v1099, 0.5
      %v1108 = vmul.f32 %v1100, 0.5
      %v1109 = vmul.f32 %v1101, 0.5
      %v1110 = vmul.f32 %v1102, 0.5
      %v1111 = vmul.f32 %v1103, 0.5
      %v1112 = vmul.f32 %v1025, %v1104
      %v1113 = vmul.f32 %v1028, %v1105
      %v1114 = vmul.f32 %v1031, %v1106
      %v1115 = vmul.f32 %v1034, %v1107
      %v1116 = vmul.f32 %v1037, %v1108
      %v1117 = vmul.f32 %v1040, %v1109
      %v1118 = vmul.f32 %v1043, %v1110
      %v1119 = vmul.f32 %v1046, %v1111
      %1120 = vmatpush.msra.mxu0 %v1001
      %1121 = vmatpush.msra.mxu0 %v1000
      %1122 = vmatpush.msra.mxu0 %v999
      %1123 = vmatpush.msra.mxu0 %v998
      %1124 = vmatpush.msra.mxu0 %v997
      %1125 = vmatpush.msra.mxu0 %v996
      %1126 = vmatpush.msra.mxu0 %v995
      %1127 = vmatpush.msra.mxu0 %v994
      %1128 = vmatpush.msra.mxu0 %v993
      %1129 = vmatpush.msra.mxu0 %v992
      %1130 = vmatpush.msra.mxu0 %v991
      %1131 = vmatpush.msra.mxu0 %v990
      %1132 = vmatpush.msra.mxu0 %v989
      %1133 = vmatpush.msra.mxu0 %v988
      %1134 = vmatpush.msra.mxu0 %v987
      %1135 = vmatpush.msra.mxu0 %v986
      %1136 = vmatmul.f32.gmra.mxu0 %v953
      %v1137 = vpop.f32.mrf.mxu0
      %v1138 = vadd.f32 %v1005, %v1137
      %1139 = vmatmul.f32.gmra.mxu0 %v954
      %v1140 = vpop.f32.mrf.mxu0
      %v1141 = vadd.f32 %v1005, %v1140
      %1142 = vmatmul.f32.gmra.mxu0 %v955
      %v1143 = vpop.f32.mrf.mxu0
      %v1144 = vadd.f32 %v1005, %v1143
      %1145 = vmatmul.f32.gmra.mxu0 %v956
      %v1146 = vpop.f32.mrf.mxu0
      %v1147 = vadd.f32 %v1005, %v1146
      %1148 = vmatmul.f32.gmra.mxu0 %v957
      %v1149 = vpop.f32.mrf.mxu0
      %v1150 = vadd.f32 %v1005, %v1149
      %1151 = vmatmul.f32.gmra.mxu0 %v958
      %v1152 = vpop.f32.mrf.mxu0
      %v1153 = vadd.f32 %v1005, %v1152
      %1154 = vmatmul.f32.gmra.mxu0 %v959
      %v1155 = vpop.f32.mrf.mxu0
      %v1156 = vadd.f32 %v1005, %v1155
      %1157 = vmatmul.f32.gmra.mxu0 %v960
      %v1158 = vpop.f32.mrf.mxu0
      %v1159 = vadd.f32 %v1005, %v1158
      %1160 = vdwg.mxu0
      %v1161 = vmul.f32 %v1138, %v1138
      %v1162 = vmul.f32 %v1141, %v1141
      %v1163 = vmul.f32 %v1144, %v1144
      %v1164 = vmul.f32 %v1147, %v1147
      %v1165 = vmul.f32 %v1150, %v1150
      %v1166 = vmul.f32 %v1153, %v1153
      %v1167 = vmul.f32 %v1156, %v1156
      %v1168 = vmul.f32 %v1159, %v1159
      %v1169 = vmul.f32 %v1138, %v1161
      %v1170 = vmul.f32 %v1141, %v1162
      %v1171 = vmul.f32 %v1144, %v1163
      %v1172 = vmul.f32 %v1147, %v1164
      %v1173 = vmul.f32 %v1150, %v1165
      %v1174 = vmul.f32 %v1153, %v1166
      %v1175 = vmul.f32 %v1156, %v1167
      %v1176 = vmul.f32 %v1159, %v1168
      %v1177 = vmul.f32 %v1169, 0.044715
      %v1178 = vmul.f32 %v1170, 0.044715
      %v1179 = vmul.f32 %v1171, 0.044715
      %v1180 = vmul.f32 %v1172, 0.044715
      %v1181 = vmul.f32 %v1173, 0.044715
      %v1182 = vmul.f32 %v1174, 0.044715
      %v1183 = vmul.f32 %v1175, 0.044715
      %v1184 = vmul.f32 %v1176, 0.044715
      %v1185 = vadd.f32 %v1138, %v1177
      %v1186 = vadd.f32 %v1141, %v1178
      %v1187 = vadd.f32 %v1144, %v1179
      %v1188 = vadd.f32 %v1147, %v1180
      %v1189 = vadd.f32 %v1150, %v1181
      %v1190 = vadd.f32 %v1153, %v1182
      %v1191 = vadd.f32 %v1156, %v1183
      %v1192 = vadd.f32 %v1159, %v1184
      %v1193 = vmul.f32 %v1185, 0.7978846
      %v1194 = vmul.f32 %v1186, 0.7978846
      %v1195 = vmul.f32 %v1187, 0.7978846
      %v1196 = vmul.f32 %v1188, 0.7978846
      %v1197 = vmul.f32 %v1189, 0.7978846
      %v1198 = vmul.f32 %v1190, 0.7978846
      %v1199 = vmul.f32 %v1191, 0.7978846
      %v1200 = vmul.f32 %v1192, 0.7978846
      %v1201 = vtanh.pop %v1193
      %v1202 = vtanh.pop %v1194
      %v1203 = vtanh.pop %v1195
      %v1204 = vtanh.pop %v1196
      %v1205 = vtanh.pop %v1197
      %v1206 = vtanh.pop %v1198
      %v1207 = vtanh.pop %v1199
      %v1208 = vtanh.pop %v1200
      %v1209 = vadd.f32 %v1201, 1.0
      %v1210 = vadd.f32 %v1202, 1.0
      %v1211 = vadd.f32 %v1203, 1.0
      %v1212 = vadd.f32 %v1204, 1.0
      %v1213 = vadd.f32 %v1205, 1.0
      %v1214 = vadd.f32 %v1206, 1.0
      %v1215 = vadd.f32 %v1207, 1.0
      %v1216 = vadd.f32 %v1208, 1.0
      %v1217 = vmul.f32 %v1209, 0.5
      %v1218 = vmul.f32 %v1210, 0.5
      %v1219 = vmul.f32 %v1211, 0.5
      %v1220 = vmul.f32 %v1212, 0.5
      %v1221 = vmul.f32 %v1213, 0.5
      %v1222 = vmul.f32 %v1214, 0.5
      %v1223 = vmul.f32 %v1215, 0.5
      %v1224 = vmul.f32 %v1216, 0.5
      %v1225 = vmul.f32 %v1138, %v1217
      %v1226 = vmul.f32 %v1141, %v1218
      %v1227 = vmul.f32 %v1144, %v1219
      %v1228 = vmul.f32 %v1147, %v1220
      %v1229 = vmul.f32 %v1150, %v1221
      %v1230 = vmul.f32 %v1153, %v1222
      %v1231 = vmul.f32 %v1156, %v1223
      %v1232 = vmul.f32 %v1159, %v1224
      %v1233 = vsub.f32 %v1112, %v1225
      %v1234 = vsub.f32 %v1113, %v1226
      %v1235 = vsub.f32 %v1114, %v1227
      %v1236 = vsub.f32 %v1115, %v1228
      %v1237 = vsub.f32 %v1116, %v1229
      %v1238 = vsub.f32 %v1117, %v1230
      %v1239 = vsub.f32 %v1118, %v1231
      %v1240 = vsub.f32 %v1119, %v1232
      %v1241 = vand.u32 2147483647, %v1233
      %v1242 = vand.u32 2147483647, %v1234
      %v1243 = vand.u32 2147483647, %v1235
      %v1244 = vand.u32 2147483647, %v1236
      %v1245 = vand.u32 2147483647, %v1237
      %v1246 = vand.u32 2147483647, %v1238
      %v1247 = vand.u32 2147483647, %v1239
      %v1248 = vand.u32 2147483647, %v1240
      %v1249 = vadd.f32 %v977, %v1241
      %v1250 = vadd.f32 %v978, %v1242
      %v1251 = vadd.f32 %v979, %v1243
      %v1252 = vadd.f32 %v980, %v1244
      %v1253 = vadd.f32 %v981, %v1245
      %v1254 = vadd.f32 %v982, %v1246
      %v1255 = vadd.f32 %v983, %v1247
      %v1256 = vadd.f32 %v984, %v1248
      %v1257 = vadd.f32 %v1249, %v1250
      %v1258 = vadd.f32 %v1257, %v1251
      %v1259 = vadd.f32 %v1258, %v1252
      %v1260 = vadd.f32 %v1259, %v1253
      %v1261 = vadd.f32 %v1260, %v1254
      %v1262 = vadd.f32 %v1261, %v1255
      %v1263 = vadd.f32 %v1262, %v1256
      %1264 = vst [vmem:[%s273] sm:$0xff] %v1263
      %p1265 = scmp.lt.s32.totalorder %s17, 1
      %s1266 = scalar_select %p1265, %s17, 1
      %s1267 = smul.addr %s1266, 8
      %s1268 = scalar_lea.vmem %s6, %s1267
      // Predicated region
      $region45: #{_lambda_.1} parent=43 // pred_check
        %p1269 = pneg %p171
      $region46: #{_lambda_.1} parent=43 // pred_check_branch
        %1271 = sbr.rel (%p1269) target = $region48
      $region47: #{_lambda_.1} parent=43 // pred_region
        _
      $region48: #{_lambda_.1} parent=43 // pred_fallthru
        _
    $region44: #{_lambda_.1} parent=5 // pred_fallthru
      _
    %p1272 = scmp.le.s32.totalorder 2, %s12
    // Predicated region
    $region49: #{_lambda_.1} parent=5 // pred_check
      %p1273 = pneg %p1272
    $region50: #{_lambda_.1} parent=5 // pred_check_branch
      %1275 = sbr.rel (%p1273) target = $region52
    $region51: #{_lambda_.1} parent=5 // pred_region
      %s1276 = ssub.s32 %s12, 2
      // Predicated region
      $region53: #{_lambda_.1} parent=51 // pred_check
        %p1277 = pneg %p177
      $region54: #{_lambda_.1} parent=51 // pred_check_branch
        %1279 = sbr.rel (%p1277) target = $region56
      $region55: #{_lambda_.1} parent=51 // pred_region
        %p1280 = scmp.lt.s32.totalorder %s18, 1
        %s1281 = scalar_select %p1280, %s18, 1
        %s1282 = smul.addr %s1281, 8
        %s1283 = scalar_lea.vmem %s6, %s1282
      $region56: #{_lambda_.1} parent=51 // pred_fallthru
        _
    $region52: #{_lambda_.1} parent=5 // pred_fallthru
      _
  $region6: #{_lambda_.1} parent=0 // loop_footer
    %s16 = sadd.s32 1, %s12
  $region7: #{_lambda_.1} parent=0 // loop_footer_branch
    %11 = sbr.rel target = $region3
  $region8: #{_lambda_.1} parent=0 // loop_exit
    _

</llo_original>
